<compile_context>
chip_gen: v7x
topology: tpu7x:2x2x1
jax: 0.10.0
libtpu: 0.0.40
codegen_flags: <defaults>
</compile_context>

<pallas_src>
import jax
import jax.numpy as jnp
from jax import lax
from jax.experimental import pallas as pl
from jax.experimental.pallas import tpu as pltpu

_COLS = 512  # slab / block lane width (multiple of 128 -> lane-dense, unmasked stores)


def _chip_tuning():
    """(ncores, max_tile_r, vmem_limit_bytes) tuned per TPU generation."""
    ncores, max_tile_r, vmem = 1, 1024, 48 * 1024 * 1024
    try:
        kind = jax.devices()[0].device_kind.lower()
    except Exception:
        kind = ""
    if any(s in kind for s in ("v4", "v5p", "7")):
        ncores = 2                      # 2 TensorCores per chip -> megacore split
        if "7" in kind:
            vmem = 44 * 1024 * 1024     # v7x has only 64 MiB physical VMEM
    return ncores, max_tile_r, vmem


def _make_kernel(n_full_rows, rem_cols, tile_r, rbpc, alpha, beta, weighted):
    """Build a kernel closed over static shape constants and (alpha, beta)."""
    groups = tile_r // 8  # sublane-groups per block; reduced in-kernel to (8, _COLS)

    def kernel(*refs):
        if weighted:
            x_ref, t_ref, w_ref, o_ref = refs
        else:
            x_ref, t_ref, o_ref = refs

        p = pl.program_id(0)   # core split (parallel)
        i = pl.program_id(1)   # streaming / reduction axis (arbitrary)

        @pl.when(i == 0)
        def _():
            o_ref[...] = jnp.zeros_like(o_ref)

        x = x_ref[...].astype(jnp.float32)
        t = t_ref[...].astype(jnp.float32)
        # |x|-softplus form: 1 exp + 1 log1p instead of 2 exp + 1 log.
        loss = jnp.maximum(x, 0.0) - x * t + jnp.log1p(jnp.exp(-jnp.abs(x)))
        if weighted:
            w = w_ref[...].astype(jnp.float32)
            loss = loss * (alpha + beta * w)      # alpha/beta baked constants

        row0 = (p * rbpc + i) * tile_r            # global row of this block's first row

        # Fast path: block lies entirely inside the fully-valid rows.
        @pl.when(row0 + tile_r <= n_full_rows)
        def _():
            o_ref[...] += loss.reshape(groups, 8, _COLS).sum(axis=0)

        # Tail path: block touches the ragged last row / padded / out-of-bounds region.
        @pl.when(row0 + tile_r > n_full_rows)
        def _():
            ridx = row0 + lax.broadcasted_iota(jnp.int32, (tile_r, _COLS), 0)
            cidx = lax.broadcasted_iota(jnp.int32, (tile_r, _COLS), 1)
            valid = (ridx < n_full_rows) | ((ridx == n_full_rows) & (cidx < rem_cols))
            masked = jnp.where(valid, loss, 0.0)  # select: NaN/inf in dead lanes is fine
            o_ref[...] += masked.reshape(groups, 8, _COLS).sum(axis=0)

    return kernel


def weighted_bce_with_logits_loss(inp, target, weight=None,
                                  alpha=1.0, beta=1.0, size_average=True):
    if target.shape != inp.shape:
        raise ValueError(
            "Target size ({}) must be the same as input size ({})".format(
                target.shape, inp.shape))
    if weight is not None and weight.shape != inp.shape:
        raise ValueError("weight must match input shape")
    alpha = float(alpha)
    beta = float(beta)

    n = int(inp.size)
    if n == 0:
        return jnp.float32(jnp.nan) if size_average else jnp.float32(0.0)

    ncores, max_tile_r, vmem_bytes = _chip_tuning()

    n_full_rows, rem_cols = divmod(n, _COLS)
    rows = n_full_rows + (1 if rem_cols else 0)

    # Per-core row tile: multiple of 32 sublanes, capped per chip generation.
    tile_r = int(pl.cdiv(rows, ncores))
    tile_r = int(max(32, min(max_tile_r, int(pl.cdiv(tile_r, 32)) * 32)))

    num_blocks = int(pl.cdiv(rows, tile_r))
    ncores = min(ncores, num_blocks)
    rbpc = int(pl.cdiv(num_blocks, ncores))    # row-blocks per core

    def slab(a):
        flat = a.reshape(-1)                   # free for contiguous arrays; native dtype
        if rem_cols:
            # Rare ragged case only: pad by < _COLS elements to the next row boundary.
            flat = jnp.pad(flat, (0, _COLS - rem_cols))
        return flat.reshape(rows, _COLS)

    last_block = num_blocks - 1
    if ncores * rbpc == num_blocks:
        data_map = lambda p, i: (p * rbpc + i, 0)
    else:
        # Trailing grid steps past the last block re-read it (clamped); their
        # contribution is fully masked out in-kernel.
        data_map = lambda p, i: (jnp.minimum(p * rbpc + i, last_block), 0)

    data_spec = pl.BlockSpec((tile_r, _COLS), data_map)
    out_spec = pl.BlockSpec((8, _COLS), lambda p, i: (p, 0))
    out_shape = jax.ShapeDtypeStruct((ncores * 8, _COLS), jnp.float32)

    if weight is None:
        kernel = _make_kernel(n_full_rows, rem_cols, tile_r, rbpc, alpha, beta, False)
        in_specs = [data_spec, data_spec]
        args = (slab(inp), slab(target))
    else:
        kernel = _make_kernel(n_full_rows, rem_cols, tile_r, rbpc, alpha, beta, True)
        in_specs = [data_spec, data_spec, data_spec]
        args = (slab(inp), slab(target), slab(weight))

    partials = pl.pallas_call(
        kernel,
        out_shape=out_shape,
        grid_spec=pltpu.PrefetchScalarGridSpec(
            num_scalar_prefetch=0,
            grid=(ncores, rbpc),
            in_specs=in_specs,
            out_specs=out_spec),
        compiler_params=pltpu.CompilerParams(
            dimension_semantics=("parallel", "arbitrary"),
            vmem_limit_bytes=vmem_bytes),
    )(*args)

    total = jnp.sum(partials, dtype=jnp.float32)   # tiny (ncores*8, 512) reduce
    if size_average:
        return total / jnp.float32(n)
    return total


def _reference(inp, target, weight, alpha, beta, size_average=True):
    x = inp.astype(jnp.float32)
    t = target.astype(jnp.float32)
    max_val = jnp.maximum(-x, 0.0)
    loss = x - x * t + max_val + jnp.log(jnp.exp(-max_val) + jnp.exp(-x - max_val))
    if weight is not None:
        loss = alpha * loss + beta * loss * weight.astype(jnp.float32)
    return loss.mean() if size_average else loss.sum()


if __name__ == "__main__":
    key = jax.random.PRNGKey(0)
    k1, k2, k3, k4, k5, k6 = jax.random.split(key, 6)

    B, Cc, H, W = 2, 4, 16, 16          # NCHW, matching the PyTorch module
    inp = jax.random.normal(k1, (B, Cc, H, W), dtype=jnp.float32)
    target = (jax.random.uniform(k2, (B, Cc, H, W)) > 0.5).astype(jnp.float32)
    weight = jax.random.uniform(k3, (B, Cc, H, W), dtype=jnp.float32)
    alpha, beta = 0.7, 0.3

    # weighted path (mean)
    out_w = jax.block_until_ready(
        weighted_bce_with_logits_loss(inp, target, weight, alpha, beta, True))
    ref_w = _reference(inp, target, weight, alpha, beta, True)
    assert jnp.allclose(out_w, ref_w, rtol=1e-5, atol=1e-5), (out_w, ref_w)

    # weight=None path (mean)
    out_n = jax.block_until_ready(
        weighted_bce_with_logits_loss(inp, target, None, alpha, beta, True))
    ref_n = _reference(inp, target, None, alpha, beta, True)
    assert jnp.allclose(out_n, ref_n, rtol=1e-5, atol=1e-5), (out_n, ref_n)

    # weighted path (sum)
    out_s = jax.block_until_ready(
        weighted_bce_with_logits_loss(inp, target, weight, alpha, beta, False))
    ref_s = _reference(inp, target, weight, alpha, beta, False)
    assert jnp.allclose(out_s, ref_s, rtol=1e-5, atol=1e-4), (out_s, ref_s)

    # ragged size (numel % 512 != 0) exercises the tail-masking / small-pad path
    shp = (3, 5, 7, 11)                 # 1155 elements
    inp2 = jax.random.normal(k4, shp, dtype=jnp.float32)
    tgt2 = (jax.random.uniform(k5, shp) > 0.5).astype(jnp.float32)
    wgt2 = jax.random.uniform(k6, shp, dtype=jnp.float32)
    out_r = jax.block_until_ready(
        weighted_bce_with_logits_loss(inp2, tgt2, wgt2, 1.2, 0.5, True))
    ref_r = _reference(inp2, tgt2, wgt2, 1.2, 0.5, True)
    assert jnp.allclose(out_r, ref_r, rtol=1e-5, atol=1e-5), (out_r, ref_r)

    print("KERNEL_OK")
</pallas_src>

<mosaic_0001>
module attributes {stable_mosaic.version = 11 : i64} {
  func.func @kernel(%arg0: i32, %arg1: i32, %arg2: memref<32x512xf32, #tpu.memory_space<vmem>>, %arg3: memref<32x512xf32, #tpu.memory_space<vmem>>, %arg4: memref<32x512xf32, #tpu.memory_space<vmem>>, %arg5: memref<8x512xf32, #tpu.memory_space<vmem>>) attributes {dimension_semantics = [#tpu.dimension_semantics<parallel>, #tpu.dimension_semantics<arbitrary>], iteration_bounds = array<i64: 1, 1>, scalar_prefetch = 0 : i64, scratch_operands = 0 : i64, tpu.core_type = #tpu.core_type<tc>, window_params = [{transform_indices = @transform_0, window_bounds = array<i64: 32, 512>}, {transform_indices = @transform_1, window_bounds = array<i64: 32, 512>}, {transform_indices = @transform_2, window_bounds = array<i64: 32, 512>}, {transform_indices = @transform_3, window_bounds = array<i64: 8, 512>}]} {
    %c0_i32 = arith.constant 0 : i32
    %0 = arith.cmpi eq, %arg1, %c0_i32 : i32
    %1 = arith.extui %0 : i1 to i32
    %c0_i32_0 = arith.constant 0 : i32
    %2 = arith.cmpi ne, %1, %c0_i32_0 : i32
    scf.if %2 {
      %cst_14 = arith.constant 0.000000e+00 : f32
      %32 = vector.broadcast %cst_14 : f32 to vector<8x512xf32>
      %c0_15 = arith.constant 0 : index
      %c0_16 = arith.constant 0 : index
      %33 = vector.load %arg5[%c0_15, %c0_16] : memref<8x512xf32, #tpu.memory_space<vmem>>, vector<8x512xf32>
      tpu.vector_store %arg5[%c0_15, %c0_16], %32 {strides = array<i32>} : memref<8x512xf32, #tpu.memory_space<vmem>>, vector<8x512xf32>,
    } else {
    }
    %c0 = arith.constant 0 : index
    %c0_1 = arith.constant 0 : index
    %3 = vector.load %arg2[%c0, %c0_1] : memref<32x512xf32, #tpu.memory_space<vmem>>, vector<32x512xf32>
    %c0_2 = arith.constant 0 : index
    %c0_3 = arith.constant 0 : index
    %4 = vector.load %arg3[%c0_2, %c0_3] : memref<32x512xf32, #tpu.memory_space<vmem>>, vector<32x512xf32>
    %cst = arith.constant 0.000000e+00 : f32
    %5 = vector.broadcast %cst : f32 to vector<32x512xf32>
    %6 = arith.maximumf %3, %5 : vector<32x512xf32>
    %7 = arith.mulf %3, %4 : vector<32x512xf32>
    %8 = arith.subf %6, %7 : vector<32x512xf32>
    %9 = math.absf %3 : vector<32x512xf32>
    %cst_4 = arith.constant 0.000000e+00 : f32
    %10 = vector.broadcast %cst_4 : f32 to vector<32x512xf32>
    %11 = arith.subf %10, %9 : vector<32x512xf32>
    %12 = math.exp %11 : vector<32x512xf32>
    %13 = math.log1p %12 : vector<32x512xf32>
    %14 = arith.addf %8, %13 : vector<32x512xf32>
    %c0_5 = arith.constant 0 : index
    %c0_6 = arith.constant 0 : index
    %15 = vector.load %arg4[%c0_5, %c0_6] : memref<32x512xf32, #tpu.memory_space<vmem>>, vector<32x512xf32>
    %cst_7 = arith.constant 3.000000e-01 : f32
    %16 = vector.broadcast %cst_7 : f32 to vector<32x512xf32>
    %17 = arith.mulf %16, %15 : vector<32x512xf32>
    %cst_8 = arith.constant 0.699999988 : f32
    %18 = vector.broadcast %cst_8 : f32 to vector<32x512xf32>
    %19 = arith.addf %18, %17 : vector<32x512xf32>
    %20 = arith.mulf %14, %19 : vector<32x512xf32>
    %c1_i32 = arith.constant 1 : i32
    %21 = arith.muli %arg0, %c1_i32 : i32
    %22 = arith.addi %21, %arg1 : i32
    %c32_i32 = arith.constant 32 : i32
    %23 = arith.muli %22, %c32_i32 : i32
    %c32_i32_9 = arith.constant 32 : i32
    %24 = arith.addi %23, %c32_i32_9 : i32
    %c4_i32 = arith.constant 4 : i32
    %25 = arith.cmpi sle, %24, %c4_i32 : i32
    %26 = arith.extui %25 : i1 to i32
    %c0_i32_10 = arith.constant 0 : i32
    %27 = arith.cmpi ne, %26, %c0_i32_10 : i32
    scf.if %27 {
      %c0_14 = arith.constant 0 : index
      %c0_15 = arith.constant 0 : index
      %32 = vector.load %arg5[%c0_14, %c0_15] : memref<8x512xf32, #tpu.memory_space<vmem>>, vector<8x512xf32>
      %33 = vector.shape_cast %20 : vector<32x512xf32> to vector<4x8x512xf32>
      %cst_16 = arith.constant dense<0.000000e+00> : vector<8x512xf32>
      %34 = vector.multi_reduction <add>, %33, %cst_16 [0] : vector<4x8x512xf32> to vector<8x512xf32>
      %35 = arith.addf %32, %34 : vector<8x512xf32>
      %c0_17 = arith.constant 0 : index
      %c0_18 = arith.constant 0 : index
      %36 = vector.load %arg5[%c0_17, %c0_18] : memref<8x512xf32, #tpu.memory_space<vmem>>, vector<8x512xf32>
      tpu.vector_store %arg5[%c0_17, %c0_18], %35 {strides = array<i32>} : memref<8x512xf32, #tpu.memory_space<vmem>>, vector<8x512xf32>,
    } else {
    }
    %c32_i32_11 = arith.constant 32 : i32
    %28 = arith.addi %23, %c32_i32_11 : i32
    %c4_i32_12 = arith.constant 4 : i32
    %29 = arith.cmpi sgt, %28, %c4_i32_12 : i32
    %30 = arith.extui %29 : i1 to i32
    %c0_i32_13 = arith.constant 0 : i32
    %31 = arith.cmpi ne, %30, %c0_i32_13 : i32
    scf.if %31 {
      %32 = tpu.iota {dimensions = array<i32: 0>} : vector<32x512xi32>
      %33 = vector.broadcast %23 : i32 to vector<32x512xi32>
      %34 = arith.addi %33, %32 : vector<32x512xi32>
      %35 = tpu.iota {dimensions = array<i32: 1>} : vector<32x512xi32>
      %c4_i32_14 = arith.constant 4 : i32
      %36 = vector.broadcast %c4_i32_14 : i32 to vector<32x512xi32>
      %37 = arith.cmpi slt, %34, %36 : vector<32x512xi32>
      %c4_i32_15 = arith.constant 4 : i32
      %38 = vector.broadcast %c4_i32_15 : i32 to vector<32x512xi32>
      %39 = arith.cmpi eq, %34, %38 : vector<32x512xi32>
      %c0_i32_16 = arith.constant 0 : i32
      %40 = vector.broadcast %c0_i32_16 : i32 to vector<32x512xi32>
      %41 = arith.cmpi slt, %35, %40 : vector<32x512xi32>
      %42 = arith.andi %39, %41 : vector<32x512xi1>
      %43 = arith.ori %37, %42 : vector<32x512xi1>
      %cst_17 = arith.constant 0.000000e+00 : f32
      %44 = vector.broadcast %cst_17 : f32 to vector<32x512xf32>
      %45 = arith.select %43, %20, %44 : vector<32x512xi1>, vector<32x512xf32>
      %c0_18 = arith.constant 0 : index
      %c0_19 = arith.constant 0 : index
      %46 = vector.load %arg5[%c0_18, %c0_19] : memref<8x512xf32, #tpu.memory_space<vmem>>, vector<8x512xf32>
      %47 = vector.shape_cast %45 : vector<32x512xf32> to vector<4x8x512xf32>
      %cst_20 = arith.constant dense<0.000000e+00> : vector<8x512xf32>
      %48 = vector.multi_reduction <add>, %47, %cst_20 [0] : vector<4x8x512xf32> to vector<8x512xf32>
      %49 = arith.addf %46, %48 : vector<8x512xf32>
      %c0_21 = arith.constant 0 : index
      %c0_22 = arith.constant 0 : index
      %50 = vector.load %arg5[%c0_21, %c0_22] : memref<8x512xf32, #tpu.memory_space<vmem>>, vector<8x512xf32>
      tpu.vector_store %arg5[%c0_21, %c0_22], %49 {strides = array<i32>} : memref<8x512xf32, #tpu.memory_space<vmem>>, vector<8x512xf32>,
    } else {
    }
    return
  }
  func.func @transform_0(%arg0: i32, %arg1: i32) -> (i32, i32) {
    %c1_i32 = arith.constant 1 : i32
    %0 = arith.muli %arg0, %c1_i32 : i32
    %1 = arith.addi %0, %arg1 : i32
    %c0_i32 = arith.constant 0 : i32
    %c0_i32_0 = arith.constant 0 : i32
    return %1, %c0_i32 : i32, i32
  }
  func.func @transform_1(%arg0: i32, %arg1: i32) -> (i32, i32) {
    %c1_i32 = arith.constant 1 : i32
    %0 = arith.muli %arg0, %c1_i32 : i32
    %1 = arith.addi %0, %arg1 : i32
    %c0_i32 = arith.constant 0 : i32
    %c0_i32_0 = arith.constant 0 : i32
    return %1, %c0_i32 : i32, i32
  }
  func.func @transform_2(%arg0: i32, %arg1: i32) -> (i32, i32) {
    %c1_i32 = arith.constant 1 : i32
    %0 = arith.muli %arg0, %c1_i32 : i32
    %1 = arith.addi %0, %arg1 : i32
    %c0_i32 = arith.constant 0 : i32
    %c0_i32_0 = arith.constant 0 : i32
    return %1, %c0_i32 : i32, i32
  }
  func.func @transform_3(%arg0: i32, %arg1: i32) -> (i32, i32) {
    %c0_i32 = arith.constant 0 : i32
    %c0_i32_0 = arith.constant 0 : i32
    return %arg0, %c0_i32 : i32, i32
  }
}

</mosaic_0001>

<llo_original>
// kernel: tpu_custom_call.1
$region0: #{tpu_custom_call.1}
  #allocation0 [shape = 'u32[]', space=smem, size = 0x4, offset = 0x4, fixed_abs, tag = 'smem constant byte address 0x4 - core index']
  #allocation1 [shape = 'u32[144,128]{1,0:T(1,128)}', space=vmem, size = 0x12000, scoped, tag = 'internal scratch']
  %s0 = inlined_call_operand.hbm [shape: f32[4,512], index: 0, kind: input, shape index: {}]
  %s1 = inlined_call_operand.hbm [shape: f32[4,512], index: 1, kind: input, shape index: {}]
  %s2 = inlined_call_operand.hbm [shape: f32[4,512], index: 2, kind: input, shape index: {}]
  %s3 = inlined_call_operand.hbm [shape: f32[8,512], index: 3, kind: output, shape index: {}]
  %s4 = sld [smem:[#allocation0]]
  $region46: #{tpu_custom_call.1} parent=0
    _
  %s6 = ssub.s32 1, %s4
  %s7 = scalar_select 0, %s6, %s4
  $region1: #{tpu_custom_call.1} parent=0
    #allocation2 [shape = 'u8[65536]{0}', space=vmem, size = 0x10000, scoped, tag = 'input window, operand 0, single buffered']
    #allocation3 [shape = 's32[1]{0}', space=sflag, size = 0x4, scoped, tag = 'scoped memory for tpu_custom_call.1']
    #allocation4 [shape = 's32[1]{0}', space=sflag, size = 0x4, scoped, tag = 'scoped memory for tpu_custom_call.1']
    #allocation5 [shape = 'u8[65536]{0}', space=vmem, size = 0x10000, scoped, tag = 'input window, operand 1, single buffered']
    #allocation6 [shape = 's32[1]{0}', space=sflag, size = 0x4, scoped, tag = 'scoped memory for tpu_custom_call.1']
    #allocation7 [shape = 'u8[65536]{0}', space=vmem, size = 0x10000, scoped, tag = 'input window, operand 2, single buffered']
    #allocation8 [shape = 'u8[16384]{0}', space=vmem, size = 0x4000, scoped, tag = 'output window, operand 0, single buffered']
    %8 = vsyncpa [#allocation3], 0
    %9 = vsyncpa [#allocation6], 0
    %10 = vsyncpa [#allocation4], 0
    // Predicated region
    $region2: #{tpu_custom_call.1} parent=1 // pred_check
      _
    $region3: #{tpu_custom_call.1} parent=1 // pred_check_branch
      %12 = sbr.rel (0) target = $region5
    $region4: #{tpu_custom_call.1} parent=1 // pred_region
      %s13 = sadd.s32 0, 0
      %s14 = smul.u32 8, %s13
      %s15 = ssub.s32 1, %s14
      %s16 = smul.u32 64, %s15
      %s17 = smul.u32 %s16, 4
      %s19 = ssub.s32 2048, %s17
      %20 = vsyncadd [#allocation3], %s19
      %p21 = scmp.ne.s32.totalorder 0, %s17
      %s22 = smul.addr %s14, 4
      %s23 = smul.addr %s22, 64
      %s24 = scalar_lea.hbm %s0, %s23
      %s25 = smul.u32 16, %s15
      %s26 = sshll.u32 [#allocation2], 4
      %s27 = int_to_ptr.vmem [resolvable:$true] %s26
      %s28 = sshll.u32 %s25, 4
      %32 = dma.hbm_to_vmem [thread:$0]  (%p21), %s24, %s28, %s27, [#allocation3], 256, 256, 16
    $region5: #{tpu_custom_call.1} parent=1 // pred_fallthru
      _
    // Predicated region
    $region6: #{tpu_custom_call.1} parent=1 // pred_check
      _
    $region7: #{tpu_custom_call.1} parent=1 // pred_check_branch
      %34 = sbr.rel (0) target = $region9
    $region8: #{tpu_custom_call.1} parent=1 // pred_region
      %s35 = sadd.s32 0, 0
      %s36 = smul.u32 8, %s35
      %s37 = ssub.s32 1, %s36
      %s38 = smul.u32 64, %s37
      %s39 = smul.u32 %s38, 4
      %s41 = ssub.s32 2048, %s39
      %42 = vsyncadd [#allocation6], %s41
      %p43 = scmp.ne.s32.totalorder 0, %s39
      %s44 = smul.addr %s36, 4
      %s45 = smul.addr %s44, 64
      %s46 = scalar_lea.hbm %s1, %s45
      %s47 = smul.u32 16, %s37
      %s48 = sshll.u32 [#allocation5], 4
      %s49 = int_to_ptr.vmem [resolvable:$true] %s48
      %s50 = sshll.u32 %s47, 4
      %54 = dma.hbm_to_vmem [thread:$0]  (%p43), %s46, %s50, %s49, [#allocation6], 256, 256, 16
    $region9: #{tpu_custom_call.1} parent=1 // pred_fallthru
      _
    // Predicated region
    $region10: #{tpu_custom_call.1} parent=1 // pred_check
      _
    $region11: #{tpu_custom_call.1} parent=1 // pred_check_branch
      %56 = sbr.rel (0) target = $region13
    $region12: #{tpu_custom_call.1} parent=1 // pred_region
      %s57 = sadd.s32 0, 0
      %s58 = smul.u32 8, %s57
      %s59 = ssub.s32 1, %s58
      %s60 = smul.u32 64, %s59
      %s61 = smul.u32 %s60, 4
      %s63 = ssub.s32 2048, %s61
      %64 = vsyncadd [#allocation6], %s63
      %p65 = scmp.ne.s32.totalorder 0, %s61
      %s66 = smul.addr %s58, 4
      %s67 = smul.addr %s66, 64
      %s68 = scalar_lea.hbm %s2, %s67
      %s69 = smul.u32 16, %s59
      %s70 = sshll.u32 [#allocation7], 4
      %s71 = int_to_ptr.vmem [resolvable:$true] %s70
      %s72 = sshll.u32 %s69, 4
      %76 = dma.hbm_to_vmem [thread:$0]  (%p65), %s68, %s72, %s71, [#allocation6], 256, 256, 16
    $region13: #{tpu_custom_call.1} parent=1 // pred_fallthru
      _
    // Predicated region
    $region14: #{tpu_custom_call.1} parent=1 // pred_check
      _
    $region15: #{tpu_custom_call.1} parent=1 // pred_check_branch
      %78 = sbr.rel (0) target = $region17
    $region16: #{tpu_custom_call.1} parent=1 // pred_region
      %79 = dma.done [#allocation3], 2048
    $region17: #{tpu_custom_call.1} parent=1 // pred_fallthru
      _
    // Predicated region
    $region18: #{tpu_custom_call.1} parent=1 // pred_check
      _
    $region19: #{tpu_custom_call.1} parent=1 // pred_check_branch
      %81 = sbr.rel (0) target = $region21
    $region20: #{tpu_custom_call.1} parent=1 // pred_region
      %82 = dma.done [#allocation6], 2048
    $region21: #{tpu_custom_call.1} parent=1 // pred_fallthru
      _
    // Predicated region
    $region22: #{tpu_custom_call.1} parent=1 // pred_check
      _
    $region23: #{tpu_custom_call.1} parent=1 // pred_check_branch
      %84 = sbr.rel (0) target = $region25
    $region24: #{tpu_custom_call.1} parent=1 // pred_region
      %85 = dma.done [#allocation6], 2048
    $region25: #{tpu_custom_call.1} parent=1 // pred_fallthru
      _
    %s86 = sadd.s32 0, 0
    %s87 = smul.u32 8, %s86
    %s88 = ssub.s32 1, %s87
    %s89 = smul.u32 64, %s88
    %s90 = smul.u32 %s89, 4
    %s91 = sadd.s32 0, 0
    %s92 = smul.u32 8, %s91
    %s93 = ssub.s32 1, %s92
    %s94 = smul.u32 64, %s93
    %s95 = smul.u32 %s94, 4
    %s96 = sadd.s32 0, 0
    %s97 = smul.u32 8, %s96
    %s98 = ssub.s32 1, %s97
    %s99 = smul.u32 64, %s98
    %s100 = smul.u32 %s99, 4
    %p101 = scmp.eq.s32.totalorder 0, 0
    // Predicated region
    $region26: #{tpu_custom_call.1} parent=1 // pred_check
      %p102 = pneg %p101
    $region27: #{tpu_custom_call.1} parent=1 // pred_check_branch
      %104 = sbr.rel (%p102) target = $region29
    $region28: #{tpu_custom_call.1} parent=1 // pred_region
      %105 = vst [vmem:[#allocation8] sm:$0xff] 0.0
      %106 = vst [vmem:[#allocation8 + $0x8] sm:$0xff] 0.0
      %107 = vst [vmem:[#allocation8 + $0x10] sm:$0xff] 0.0
      %108 = vst [vmem:[#allocation8 + $0x18] sm:$0xff] 0.0
    $region29: #{tpu_custom_call.1} parent=1 // pred_fallthru
      _
    %v109 = vld [vmem:[#allocation2] sm:$0xff]
    %v110 = vld [vmem:[#allocation2 + $0x8] sm:$0xff]
    %v111 = vld [vmem:[#allocation2 + $0x10] sm:$0xff]
    %v112 = vld [vmem:[#allocation2 + $0x18] sm:$0xff]
    %v113 = vld [vmem:[#allocation2 + $0x20] sm:$0xff]
    %v114 = vld [vmem:[#allocation2 + $0x28] sm:$0xff]
    %v115 = vld [vmem:[#allocation2 + $0x30] sm:$0xff]
    %v116 = vld [vmem:[#allocation2 + $0x38] sm:$0xff]
    %v117 = vld [vmem:[#allocation2 + $0x40] sm:$0xff]
    %v118 = vld [vmem:[#allocation2 + $0x48] sm:$0xff]
    %v119 = vld [vmem:[#allocation2 + $0x50] sm:$0xff]
    %v120 = vld [vmem:[#allocation2 + $0x58] sm:$0xff]
    %v121 = vld [vmem:[#allocation2 + $0x60] sm:$0xff]
    %v122 = vld [vmem:[#allocation2 + $0x68] sm:$0xff]
    %v123 = vld [vmem:[#allocation2 + $0x70] sm:$0xff]
    %v124 = vld [vmem:[#allocation2 + $0x78] sm:$0xff]
    %v125 = vld [vmem:[#allocation5] sm:$0xff]
    %v126 = vld [vmem:[#allocation5 + $0x8] sm:$0xff]
    %v127 = vld [vmem:[#allocation5 + $0x10] sm:$0xff]
    %v128 = vld [vmem:[#allocation5 + $0x18] sm:$0xff]
    %v129 = vld [vmem:[#allocation5 + $0x20] sm:$0xff]
    %v130 = vld [vmem:[#allocation5 + $0x28] sm:$0xff]
    %v131 = vld [vmem:[#allocation5 + $0x30] sm:$0xff]
    %v132 = vld [vmem:[#allocation5 + $0x38] sm:$0xff]
    %v133 = vld [vmem:[#allocation5 + $0x40] sm:$0xff]
    %v134 = vld [vmem:[#allocation5 + $0x48] sm:$0xff]
    %v135 = vld [vmem:[#allocation5 + $0x50] sm:$0xff]
    %v136 = vld [vmem:[#allocation5 + $0x58] sm:$0xff]
    %v137 = vld [vmem:[#allocation5 + $0x60] sm:$0xff]
    %v138 = vld [vmem:[#allocation5 + $0x68] sm:$0xff]
    %v139 = vld [vmem:[#allocation5 + $0x70] sm:$0xff]
    %v140 = vld [vmem:[#allocation5 + $0x78] sm:$0xff]
    %v141 = vmax.f32 %v109, 0.0
    %v142 = vmax.f32 %v110, 0.0
    %v143 = vmax.f32 %v111, 0.0
    %v144 = vmax.f32 %v112, 0.0
    %v145 = vmax.f32 %v113, 0.0
    %v146 = vmax.f32 %v114, 0.0
    %v147 = vmax.f32 %v115, 0.0
    %v148 = vmax.f32 %v116, 0.0
    %v149 = vmax.f32 %v117, 0.0
    %v150 = vmax.f32 %v118, 0.0
    %v151 = vmax.f32 %v119, 0.0
    %v152 = vmax.f32 %v120, 0.0
    %v153 = vmax.f32 %v121, 0.0
    %v154 = vmax.f32 %v122, 0.0
    %v155 = vmax.f32 %v123, 0.0
    %v156 = vmax.f32 %v124, 0.0
    %v157 = vmul.f32 %v109, %v125
    %v158 = vmul.f32 %v110, %v126
    %v159 = vmul.f32 %v111, %v127
    %v160 = vmul.f32 %v112, %v128
    %v161 = vmul.f32 %v113, %v129
    %v162 = vmul.f32 %v114, %v130
    %v163 = vmul.f32 %v115, %v131
    %v164 = vmul.f32 %v116, %v132
    %v165 = vmul.f32 %v117, %v133
    %v166 = vmul.f32 %v118, %v134
    %v167 = vmul.f32 %v119, %v135
    %v168 = vmul.f32 %v120, %v136
    %v169 = vmul.f32 %v121, %v137
    %v170 = vmul.f32 %v122, %v138
    %v171 = vmul.f32 %v123, %v139
    %v172 = vmul.f32 %v124, %v140
    %v173 = vsub.f32 %v141, %v157
    %v174 = vsub.f32 %v142, %v158
    %v175 = vsub.f32 %v143, %v159
    %v176 = vsub.f32 %v144, %v160
    %v177 = vsub.f32 %v145, %v161
    %v178 = vsub.f32 %v146, %v162
    %v179 = vsub.f32 %v147, %v163
    %v180 = vsub.f32 %v148, %v164
    %v181 = vsub.f32 %v149, %v165
    %v182 = vsub.f32 %v150, %v166
    %v183 = vsub.f32 %v151, %v167
    %v184 = vsub.f32 %v152, %v168
    %v185 = vsub.f32 %v153, %v169
    %v186 = vsub.f32 %v154, %v170
    %v187 = vsub.f32 %v155, %v171
    %v188 = vsub.f32 %v156, %v172
    %v189 = vand.u32 2147483647, %v109
    %v190 = vand.u32 2147483647, %v110
    %v191 = vand.u32 2147483647, %v111
    %v192 = vand.u32 2147483647, %v112
    %v193 = vand.u32 2147483647, %v113
    %v194 = vand.u32 2147483647, %v114
    %v195 = vand.u32 2147483647, %v115
    %v196 = vand.u32 2147483647, %v116
    %v197 = vand.u32 2147483647, %v117
    %v198 = vand.u32 2147483647, %v118
    %v199 = vand.u32 2147483647, %v119
    %v200 = vand.u32 2147483647, %v120
    %v201 = vand.u32 2147483647, %v121
    %v202 = vand.u32 2147483647, %v122
    %v203 = vand.u32 2147483647, %v123
    %v204 = vand.u32 2147483647, %v124
    %v205 = vsub.f32 0.0, %v189
    %v206 = vsub.f32 0.0, %v190
    %v207 = vsub.f32 0.0, %v191
    %v208 = vsub.f32 0.0, %v192
    %v209 = vsub.f32 0.0, %v193
    %v210 = vsub.f32 0.0, %v194
    %v211 = vsub.f32 0.0, %v195
    %v212 = vsub.f32 0.0, %v196
    %v213 = vsub.f32 0.0, %v197
    %v214 = vsub.f32 0.0, %v198
    %v215 = vsub.f32 0.0, %v199
    %v216 = vsub.f32 0.0, %v200
    %v217 = vsub.f32 0.0, %v201
    %v218 = vsub.f32 0.0, %v202
    %v219 = vsub.f32 0.0, %v203
    %v220 = vsub.f32 0.0, %v204
    %v221 = vmul.f32 %v205, 1.442695
    %v222 = vpow.pop %v221
    %v223 = vmul.f32 %v206, 1.442695
    %v224 = vpow.pop %v223
    %v225 = vmul.f32 %v207, 1.442695
    %v226 = vpow.pop %v225
    %v227 = vmul.f32 %v208, 1.442695
    %v228 = vpow.pop %v227
    %v229 = vmul.f32 %v209, 1.442695
    %v230 = vpow.pop %v229
    %v231 = vmul.f32 %v210, 1.442695
    %v232 = vpow.pop %v231
    %v233 = vmul.f32 %v211, 1.442695
    %v234 = vpow.pop %v233
    %v235 = vmul.f32 %v212, 1.442695
    %v236 = vpow.pop %v235
    %v237 = vmul.f32 %v213, 1.442695
    %v238 = vpow.pop %v237
    %v239 = vmul.f32 %v214, 1.442695
    %v240 = vpow.pop %v239
    %v241 = vmul.f32 %v215, 1.442695
    %v242 = vpow.pop %v241
    %v243 = vmul.f32 %v216, 1.442695
    %v244 = vpow.pop %v243
    %v245 = vmul.f32 %v217, 1.442695
    %v246 = vpow.pop %v245
    %v247 = vmul.f32 %v218, 1.442695
    %v248 = vpow.pop %v247
    %v249 = vmul.f32 %v219, 1.442695
    %v250 = vpow.pop %v249
    %v251 = vmul.f32 %v220, 1.442695
    %v252 = vpow.pop %v251
    %v253 = vadd.f32 %v222, 1.0
    %v254 = vlog2.pop %v253
    %v255 = vmul.f32 %v254, 0.6931472
    %v256 = vmul.f32 -0.5, %v222
    %v257 = vadd.f32 %v256, 1.0
    %v258 = vmul.f32 %v257, %v222
    %v259 = vand.u32 2147483647, %v222
    %vm260 = vcmp.lt.f32.partialorder %v259, 0.0004427343
    %v261 = vsel %vm260, %v258, %v255
    %v262 = vadd.f32 %v224, 1.0
    %v263 = vlog2.pop %v262
    %v264 = vmul.f32 %v263, 0.6931472
    %v265 = vmul.f32 -0.5, %v224
    %v266 = vadd.f32 %v265, 1.0
    %v267 = vmul.f32 %v266, %v224
    %v268 = vand.u32 2147483647, %v224
    %vm269 = vcmp.lt.f32.partialorder %v268, 0.0004427343
    %v270 = vsel %vm269, %v267, %v264
    %v271 = vadd.f32 %v226, 1.0
    %v272 = vlog2.pop %v271
    %v273 = vmul.f32 %v272, 0.6931472
    %v274 = vmul.f32 -0.5, %v226
    %v275 = vadd.f32 %v274, 1.0
    %v276 = vmul.f32 %v275, %v226
    %v277 = vand.u32 2147483647, %v226
    %vm278 = vcmp.lt.f32.partialorder %v277, 0.0004427343
    %v279 = vsel %vm278, %v276, %v273
    %v280 = vadd.f32 %v228, 1.0
    %v281 = vlog2.pop %v280
    %v282 = vmul.f32 %v281, 0.6931472
    %v283 = vmul.f32 -0.5, %v228
    %v284 = vadd.f32 %v283, 1.0
    %v285 = vmul.f32 %v284, %v228
    %v286 = vand.u32 2147483647, %v228
    %vm287 = vcmp.lt.f32.partialorder %v286, 0.0004427343
    %v288 = vsel %vm287, %v285, %v282
    %v289 = vadd.f32 %v230, 1.0
    %v290 = vlog2.pop %v289
    %v291 = vmul.f32 %v290, 0.6931472
    %v292 = vmul.f32 -0.5, %v230
    %v293 = vadd.f32 %v292, 1.0
    %v294 = vmul.f32 %v293, %v230
    %v295 = vand.u32 2147483647, %v230
    %vm296 = vcmp.lt.f32.partialorder %v295, 0.0004427343
    %v297 = vsel %vm296, %v294, %v291
    %v298 = vadd.f32 %v232, 1.0
    %v299 = vlog2.pop %v298
    %v300 = vmul.f32 %v299, 0.6931472
    %v301 = vmul.f32 -0.5, %v232
    %v302 = vadd.f32 %v301, 1.0
    %v303 = vmul.f32 %v302, %v232
    %v304 = vand.u32 2147483647, %v232
    %vm305 = vcmp.lt.f32.partialorder %v304, 0.0004427343
    %v306 = vsel %vm305, %v303, %v300
    %v307 = vadd.f32 %v234, 1.0
    %v308 = vlog2.pop %v307
    %v309 = vmul.f32 %v308, 0.6931472
    %v310 = vmul.f32 -0.5, %v234
    %v311 = vadd.f32 %v310, 1.0
    %v312 = vmul.f32 %v311, %v234
    %v313 = vand.u32 2147483647, %v234
    %vm314 = vcmp.lt.f32.partialorder %v313, 0.0004427343
    %v315 = vsel %vm314, %v312, %v309
    %v316 = vadd.f32 %v236, 1.0
    %v317 = vlog2.pop %v316
    %v318 = vmul.f32 %v317, 0.6931472
    %v319 = vmul.f32 -0.5, %v236
    %v320 = vadd.f32 %v319, 1.0
    %v321 = vmul.f32 %v320, %v236
    %v322 = vand.u32 2147483647, %v236
    %vm323 = vcmp.lt.f32.partialorder %v322, 0.0004427343
    %v324 = vsel %vm323, %v321, %v318
    %v325 = vadd.f32 %v238, 1.0
    %v326 = vlog2.pop %v325
    %v327 = vmul.f32 %v326, 0.6931472
    %v328 = vmul.f32 -0.5, %v238
    %v329 = vadd.f32 %v328, 1.0
    %v330 = vmul.f32 %v329, %v238
    %v331 = vand.u32 2147483647, %v238
    %vm332 = vcmp.lt.f32.partialorder %v331, 0.0004427343
    %v333 = vsel %vm332, %v330, %v327
    %v334 = vadd.f32 %v240, 1.0
    %v335 = vlog2.pop %v334
    %v336 = vmul.f32 %v335, 0.6931472
    %v337 = vmul.f32 -0.5, %v240
    %v338 = vadd.f32 %v337, 1.0
    %v339 = vmul.f32 %v338, %v240
    %v340 = vand.u32 2147483647, %v240
    %vm341 = vcmp.lt.f32.partialorder %v340, 0.0004427343
    %v342 = vsel %vm341, %v339, %v336
    %v343 = vadd.f32 %v242, 1.0
    %v344 = vlog2.pop %v343
    %v345 = vmul.f32 %v344, 0.6931472
    %v346 = vmul.f32 -0.5, %v242
    %v347 = vadd.f32 %v346, 1.0
    %v348 = vmul.f32 %v347, %v242
    %v349 = vand.u32 2147483647, %v242
    %vm350 = vcmp.lt.f32.partialorder %v349, 0.0004427343
    %v351 = vsel %vm350, %v348, %v345
    %v352 = vadd.f32 %v244, 1.0
    %v353 = vlog2.pop %v352
    %v354 = vmul.f32 %v353, 0.6931472
    %v355 = vmul.f32 -0.5, %v244
    %v356 = vadd.f32 %v355, 1.0
    %v357 = vmul.f32 %v356, %v244
    %v358 = vand.u32 2147483647, %v244
    %vm359 = vcmp.lt.f32.partialorder %v358, 0.0004427343
    %v360 = vsel %vm359, %v357, %v354
    %v361 = vadd.f32 %v246, 1.0
    %v362 = vlog2.pop %v361
    %v363 = vmul.f32 %v362, 0.6931472
    %v364 = vmul.f32 -0.5, %v246
    %v365 = vadd.f32 %v364, 1.0
    %v366 = vmul.f32 %v365, %v246
    %v367 = vand.u32 2147483647, %v246
    %vm368 = vcmp.lt.f32.partialorder %v367, 0.0004427343
    %v369 = vsel %vm368, %v366, %v363
    %v370 = vadd.f32 %v248, 1.0
    %v371 = vlog2.pop %v370
    %v372 = vmul.f32 %v371, 0.6931472
    %v373 = vmul.f32 -0.5, %v248
    %v374 = vadd.f32 %v373, 1.0
    %v375 = vmul.f32 %v374, %v248
    %v376 = vand.u32 2147483647, %v248
    %vm377 = vcmp.lt.f32.partialorder %v376, 0.0004427343
    %v378 = vsel %vm377, %v375, %v372
    %v379 = vadd.f32 %v250, 1.0
    %v380 = vlog2.pop %v379
    %v381 = vmul.f32 %v380, 0.6931472
    %v382 = vmul.f32 -0.5, %v250
    %v383 = vadd.f32 %v382, 1.0
    %v384 = vmul.f32 %v383, %v250
    %v385 = vand.u32 2147483647, %v250
    %vm386 = vcmp.lt.f32.partialorder %v385, 0.0004427343
    %v387 = vsel %vm386, %v384, %v381
    %v388 = vadd.f32 %v252, 1.0
    %v389 = vlog2.pop %v388
    %v390 = vmul.f32 %v389, 0.6931472
    %v391 = vmul.f32 -0.5, %v252
    %v392 = vadd.f32 %v391, 1.0
    %v393 = vmul.f32 %v392, %v252
    %v394 = vand.u32 2147483647, %v252
    %vm395 = vcmp.lt.f32.partialorder %v394, 0.0004427343
    %v396 = vsel %vm395, %v393, %v390
    %v397 = vadd.f32 %v173, %v261
    %v398 = vadd.f32 %v174, %v270
    %v399 = vadd.f32 %v175, %v279
    %v400 = vadd.f32 %v176, %v288
    %v401 = vadd.f32 %v177, %v297
    %v402 = vadd.f32 %v178, %v306
    %v403 = vadd.f32 %v179, %v315
    %v404 = vadd.f32 %v180, %v324
    %v405 = vadd.f32 %v181, %v333
    %v406 = vadd.f32 %v182, %v342
    %v407 = vadd.f32 %v183, %v351
    %v408 = vadd.f32 %v184, %v360
    %v409 = vadd.f32 %v185, %v369
    %v410 = vadd.f32 %v186, %v378
    %v411 = vadd.f32 %v187, %v387
    %v412 = vadd.f32 %v188, %v396
    %v413 = vld [vmem:[#allocation7] sm:$0xff]
    %v414 = vld [vmem:[#allocation7 + $0x8] sm:$0xff]
    %v415 = vld [vmem:[#allocation7 + $0x10] sm:$0xff]
    %v416 = vld [vmem:[#allocation7 + $0x18] sm:$0xff]
    %v417 = vld [vmem:[#allocation7 + $0x20] sm:$0xff]
    %v418 = vld [vmem:[#allocation7 + $0x28] sm:$0xff]
    %v419 = vld [vmem:[#allocation7 + $0x30] sm:$0xff]
    %v420 = vld [vmem:[#allocation7 + $0x38] sm:$0xff]
    %v421 = vld [vmem:[#allocation7 + $0x40] sm:$0xff]
    %v422 = vld [vmem:[#allocation7 + $0x48] sm:$0xff]
    %v423 = vld [vmem:[#allocation7 + $0x50] sm:$0xff]
    %v424 = vld [vmem:[#allocation7 + $0x58] sm:$0xff]
    %v425 = vld [vmem:[#allocation7 + $0x60] sm:$0xff]
    %v426 = vld [vmem:[#allocation7 + $0x68] sm:$0xff]
    %v427 = vld [vmem:[#allocation7 + $0x70] sm:$0xff]
    %v428 = vld [vmem:[#allocation7 + $0x78] sm:$0xff]
    %v429 = vmul.f32 %v413, 0.3
    %v430 = vmul.f32 %v414, 0.3
    %v431 = vmul.f32 %v415, 0.3
    %v432 = vmul.f32 %v416, 0.3
    %v433 = vmul.f32 %v417, 0.3
    %v434 = vmul.f32 %v418, 0.3
    %v435 = vmul.f32 %v419, 0.3
    %v436 = vmul.f32 %v420, 0.3
    %v437 = vmul.f32 %v421, 0.3
    %v438 = vmul.f32 %v422, 0.3
    %v439 = vmul.f32 %v423, 0.3
    %v440 = vmul.f32 %v424, 0.3
    %v441 = vmul.f32 %v425, 0.3
    %v442 = vmul.f32 %v426, 0.3
    %v443 = vmul.f32 %v427, 0.3
    %v444 = vmul.f32 %v428, 0.3
    %v445 = vadd.f32 %v429, 0.7
    %v446 = vadd.f32 %v430, 0.7
    %v447 = vadd.f32 %v431, 0.7
    %v448 = vadd.f32 %v432, 0.7
    %v449 = vadd.f32 %v433, 0.7
    %v450 = vadd.f32 %v434, 0.7
    %v451 = vadd.f32 %v435, 0.7
    %v452 = vadd.f32 %v436, 0.7
    %v453 = vadd.f32 %v437, 0.7
    %v454 = vadd.f32 %v438, 0.7
    %v455 = vadd.f32 %v439, 0.7
    %v456 = vadd.f32 %v440, 0.7
    %v457 = vadd.f32 %v441, 0.7
    %v458 = vadd.f32 %v442, 0.7
    %v459 = vadd.f32 %v443, 0.7
    %v460 = vadd.f32 %v444, 0.7
    %v461 = vmul.f32 %v397, %v445
    %v462 = vmul.f32 %v398, %v446
    %v463 = vmul.f32 %v399, %v447
    %v464 = vmul.f32 %v400, %v448
    %v465 = vmul.f32 %v401, %v449
    %v466 = vmul.f32 %v402, %v450
    %v467 = vmul.f32 %v403, %v451
    %v468 = vmul.f32 %v404, %v452
    %v469 = vmul.f32 %v405, %v453
    %v470 = vmul.f32 %v406, %v454
    %v471 = vmul.f32 %v407, %v455
    %v472 = vmul.f32 %v408, %v456
    %v473 = vmul.f32 %v409, %v457
    %v474 = vmul.f32 %v410, %v458
    %v475 = vmul.f32 %v411, %v459
    %v476 = vmul.f32 %v412, %v460
    %s477 = sadd.s32 0, 0
    %s478 = smul.u32 %s477, 32
    %s479 = sadd.s32 %s478, 32
    %p480 = scmp.le.s32.totalorder %s479, 4
    // Predicated region
    $region30: #{tpu_custom_call.1} parent=1 // pred_check
      %p481 = pneg %p480
    $region31: #{tpu_custom_call.1} parent=1 // pred_check_branch
      %483 = sbr.rel (%p481) target = $region33
    $region32: #{tpu_custom_call.1} parent=1 // pred_region
      %v484 = vld [vmem:[#allocation8] sm:$0xff]
      %v485 = vld [vmem:[#allocation8 + $0x8] sm:$0xff]
      %v486 = vld [vmem:[#allocation8 + $0x10] sm:$0xff]
      %v487 = vld [vmem:[#allocation8 + $0x18] sm:$0xff]
      %v504 = vcombine.low %v461, %v463
      %v505 = vcombine.high %v461, %v463
      %v506 = vcombine.low %v462, %v464
      %v507 = vcombine.high %v462, %v464
      %v508 = vcombine.low %v465, %v467
      %v509 = vcombine.high %v465, %v467
      %v510 = vcombine.low %v466, %v468
      %v511 = vcombine.high %v466, %v468
      %v512 = vcombine.low %v469, %v471
      %v513 = vcombine.high %v469, %v471
      %v514 = vcombine.low %v470, %v472
      %v515 = vcombine.high %v470, %v472
      %v516 = vcombine.low %v473, %v475
      %v517 = vcombine.high %v473, %v475
      %v518 = vcombine.low %v474, %v476
      %v519 = vcombine.high %v474, %v476
      %v536 = vadd.f32 %v504, %v508
      %v537 = vadd.f32 %v536, %v512
      %v538 = vadd.f32 %v537, %v516
      %v539 = vadd.f32 %v505, %v509
      %v540 = vadd.f32 %v539, %v513
      %v541 = vadd.f32 %v540, %v517
      %v542 = vadd.f32 %v506, %v510
      %v543 = vadd.f32 %v542, %v514
      %v544 = vadd.f32 %v543, %v518
      %v545 = vadd.f32 %v507, %v511
      %v546 = vadd.f32 %v545, %v515
      %v547 = vadd.f32 %v546, %v519
      %v548 = vadd.f32 %v484, %v538
      %v549 = vadd.f32 %v485, %v541
      %v550 = vadd.f32 %v486, %v544
      %v551 = vadd.f32 %v487, %v547
      %552 = vst [vmem:[#allocation8] sm:$0xff] %v548
      %553 = vst [vmem:[#allocation8 + $0x8] sm:$0xff] %v549
      %554 = vst [vmem:[#allocation8 + $0x10] sm:$0xff] %v550
      %555 = vst [vmem:[#allocation8 + $0x18] sm:$0xff] %v551
    $region33: #{tpu_custom_call.1} parent=1 // pred_fallthru
      _
    %p556 = scmp.gt.s32.totalorder %s479, 4
    // Predicated region
    $region34: #{tpu_custom_call.1} parent=1 // pred_check
      %p557 = pneg %p556
    $region35: #{tpu_custom_call.1} parent=1 // pred_check_branch
      %559 = sbr.rel (%p557) target = $region37
    $region36: #{tpu_custom_call.1} parent=1 // pred_region
      %v560 = vlaneseq
      %v561 = vshrl.u32 %v560, 7
      %v562 = vadd.s32 %v561, 8
      %v563 = vadd.s32 %v561, 16
      %v564 = vadd.s32 %v561, 24
      %v565 = vstv %s478
      %v566 = vadd.s32 %v565, %v561
      %v567 = vadd.s32 %v565, %v562
      %v568 = vadd.s32 %v565, %v563
      %v569 = vadd.s32 %v565, %v564
      %v570 = vlaneseq
      %v571 = vand.u32 %v570, 127
      %v572 = vadd.s32 %v571, 128
      %v573 = vadd.s32 %v571, 256
      %v574 = vadd.s32 %v571, 384
      %vm575 = vcmp.lt.s32.totalorder %v566, 4
      %vm576 = vcmp.lt.s32.totalorder %v567, 4
      %vm577 = vcmp.lt.s32.totalorder %v568, 4
      %vm578 = vcmp.lt.s32.totalorder %v569, 4
      %vm579 = vcmp.eq.s32.totalorder %v566, 4
      %vm580 = vcmp.eq.s32.totalorder %v567, 4
      %vm581 = vcmp.eq.s32.totalorder %v568, 4
      %vm582 = vcmp.eq.s32.totalorder %v569, 4
      %vm583 = vcmp.lt.s32.totalorder %v571, 0
      %vm584 = vcmp.lt.s32.totalorder %v572, 0
      %vm585 = vcmp.lt.s32.totalorder %v573, 0
      %vm586 = vcmp.lt.s32.totalorder %v574, 0
      %vm587 = vmand %vm579, %vm583
      %vm588 = vmand %vm579, %vm584
      %vm589 = vmand %vm579, %vm585
      %vm590 = vmand %vm579, %vm586
      %vm591 = vmand %vm580, %vm583
      %vm592 = vmand %vm580, %vm584
      %vm593 = vmand %vm580, %vm585
      %vm594 = vmand %vm580, %vm586
      %vm595 = vmand %vm581, %vm583
      %vm596 = vmand %vm581, %vm584
      %vm597 = vmand %vm581, %vm585
      %vm598 = vmand %vm581, %vm586
      %vm599 = vmand %vm582, %vm583
      %vm600 = vmand %vm582, %vm584
      %vm601 = vmand %vm582, %vm585
      %vm602 = vmand %vm582, %vm586
      %vm603 = vmor %vm575, %vm587
      %vm604 = vmor %vm575, %vm588
      %vm605 = vmor %vm575, %vm589
      %vm606 = vmor %vm575, %vm590
      %vm607 = vmor %vm576, %vm591
      %vm608 = vmor %vm576, %vm592
      %vm609 = vmor %vm576, %vm593
      %vm610 = vmor %vm576, %vm594
      %vm611 = vmor %vm577, %vm595
      %vm612 = vmor %vm577, %vm596
      %vm613 = vmor %vm577, %vm597
      %vm614 = vmor %vm577, %vm598
      %vm615 = vmor %vm578, %vm599
      %vm616 = vmor %vm578, %vm600
      %vm617 = vmor %vm578, %vm601
      %vm618 = vmor %vm578, %vm602
      %v635 = vcombine.low %v461, %v463
      %v636 = vcombine.high %v461, %v463
      %v637 = vcombine.low %v462, %v464
      %v638 = vcombine.high %v462, %v464
      %v639 = vcombine.low %v465, %v467
      %v640 = vcombine.high %v465, %v467
      %v641 = vcombine.low %v466, %v468
      %v642 = vcombine.high %v466, %v468
      %v643 = vcombine.low %v469, %v471
      %v644 = vcombine.high %v469, %v471
      %v645 = vcombine.low %v470, %v472
      %v646 = vcombine.high %v470, %v472
      %v647 = vcombine.low %v473, %v475
      %v648 = vcombine.high %v473, %v475
      %v649 = vcombine.low %v474, %v476
      %v650 = vcombine.high %v474, %v476
      %v667 = vsel %vm603, %v635, 0.0
      %v668 = vsel %vm604, %v636, 0.0
      %v669 = vsel %vm605, %v637, 0.0
      %v670 = vsel %vm606, %v638, 0.0
      %v671 = vsel %vm607, %v639, 0.0
      %v672 = vsel %vm608, %v640, 0.0
      %v673 = vsel %vm609, %v641, 0.0
      %v674 = vsel %vm610, %v642, 0.0
      %v675 = vsel %vm611, %v643, 0.0
      %v676 = vsel %vm612, %v644, 0.0
      %v677 = vsel %vm613, %v645, 0.0
      %v678 = vsel %vm614, %v646, 0.0
      %v679 = vsel %vm615, %v647, 0.0
      %v680 = vsel %vm616, %v648, 0.0
      %v681 = vsel %vm617, %v649, 0.0
      %v682 = vsel %vm618, %v650, 0.0
      %v683 = vld [vmem:[#allocation8] sm:$0xff]
      %v684 = vld [vmem:[#allocation8 + $0x8] sm:$0xff]
      %v685 = vld [vmem:[#allocation8 + $0x10] sm:$0xff]
      %v686 = vld [vmem:[#allocation8 + $0x18] sm:$0xff]
      %v687 = vadd.f32 %v667, %v671
      %v688 = vadd.f32 %v687, %v675
      %v689 = vadd.f32 %v688, %v679
      %v690 = vadd.f32 %v668, %v672
      %v691 = vadd.f32 %v690, %v676
      %v692 = vadd.f32 %v691, %v680
      %v693 = vadd.f32 %v669, %v673
      %v694 = vadd.f32 %v693, %v677
      %v695 = vadd.f32 %v694, %v681
      %v696 = vadd.f32 %v670, %v674
      %v697 = vadd.f32 %v696, %v678
      %v698 = vadd.f32 %v697, %v682
      %v699 = vadd.f32 %v683, %v689
      %v700 = vadd.f32 %v684, %v692
      %v701 = vadd.f32 %v685, %v695
      %v702 = vadd.f32 %v686, %v698
      %703 = vst [vmem:[#allocation8] sm:$0xff] %v699
      %704 = vst [vmem:[#allocation8 + $0x8] sm:$0xff] %v700
      %705 = vst [vmem:[#allocation8 + $0x10] sm:$0xff] %v701
      %706 = vst [vmem:[#allocation8 + $0x18] sm:$0xff] %v702
    $region37: #{tpu_custom_call.1} parent=1 // pred_fallthru
      _
    // Predicated region
    $region38: #{tpu_custom_call.1} parent=1 // pred_check
      _
    $region39: #{tpu_custom_call.1} parent=1 // pred_check_branch
      %708 = sbr.rel (0) target = $region41
    $region40: #{tpu_custom_call.1} parent=1 // pred_region
      %s710 = ssub.s32 512, 512
      %711 = vsyncadd [#allocation4], %s710
      %s713 = sshll.u32 [#allocation8], 4
      %s714 = int_to_ptr.vmem [resolvable:$true] %s713
      %716 = dma.vmem_to_hbm [thread:$0]  %s714, 512, %s3, [#allocation4]
    $region41: #{tpu_custom_call.1} parent=1 // pred_fallthru
      _
    // Predicated region
    $region42: #{tpu_custom_call.1} parent=1 // pred_check
      _
    $region43: #{tpu_custom_call.1} parent=1 // pred_check_branch
      %718 = sbr.rel (0) target = $region45
    $region44: #{tpu_custom_call.1} parent=1 // pred_region
      %719 = dma.done [#allocation4], 512
    $region45: #{tpu_custom_call.1} parent=1 // pred_fallthru
      _
    %720 = vsyncpa [#allocation3], 1
    %721 = vsyncpa [#allocation6], 1
    %722 = vsyncpa [#allocation4], 1

</llo_original>
